<compile_context>
chip_gen: v6e
topology: v6e:2x2x1
jax: 0.10.0
libtpu: 0.0.40
codegen_flags: <defaults>
</compile_context>

<pallas_src>
import functools

import jax
import jax.numpy as jnp
from jax.experimental import pallas as pl
from jax.experimental.pallas import tpu as pltpu


def _round_up(x, m):
    return (x + m - 1) // m * m


def _mix32(h):
    # murmur3-style 32-bit finalizer (uint32 arithmetic, wraps as expected)
    h = h ^ (h >> 16)
    h = h * jnp.uint32(0x7FEB352D)
    h = h ^ (h >> 15)
    h = h * jnp.uint32(0x846CA68B)
    h = h ^ (h >> 16)
    return h


# ----------------------------------------------------------------------------
# Pallas kernel: fused conv-as-matmul + InstanceNorm(affine) + activation +
#                dropout, one batch element per grid step.
# ----------------------------------------------------------------------------
def _unet_block_kernel(seed_ref, patches_ref, w_ref, b_ref, gamma_ref, beta_ref,
                       o_ref, *, alpha, use_dropout, eps):
    # patches_ref: (1, G, P, Kp) bf16, w_ref: (G, Kp, Cp) bf16
    # b/gamma/beta: (1, Cp) f32,       o_ref: (1, G, P, Cp) f32
    x = patches_ref[0]                        # (G, P, Kp)
    w = w_ref[...]                            # (G, Kp, Cp)
    G, P, _ = x.shape
    Cp = w.shape[-1]

    # conv as batched MXU matmul, f32 accumulation
    y = jnp.einsum("gpk,gkc->gpc", x, w, preferred_element_type=jnp.float32)
    y = y.reshape(G * P, Cp) + b_ref[...]     # (G*P, Cp)

    # InstanceNorm2d: per-channel stats over the full spatial extent, one pass
    inv_n = 1.0 / (G * P)
    s = jnp.sum(y, axis=0, keepdims=True)                 # (1, Cp)
    ss = jnp.sum(y * y, axis=0, keepdims=True)            # (1, Cp)
    mean = s * inv_n
    var = jnp.maximum(ss * inv_n - mean * mean, 0.0)
    scale = jax.lax.rsqrt(var + eps) * gamma_ref[...]     # gamma has dropout
    yn = (y - mean) * scale + beta_ref[...]               # scale folded in

    # ReLU (alpha == 0) or LeakyReLU(negative_slope=alpha)
    if alpha == 0.0:
        act = jnp.maximum(yn, 0.0)
    else:
        act = jnp.where(yn > 0, yn, alpha * yn)

    if use_dropout:
        # Stateless Bernoulli(0.5) mask; the 1/(1-p)=2 scale is already folded
        # into gamma/beta by the wrapper (positive scale commutes with ReLU).
        r = jax.lax.broadcasted_iota(jnp.uint32, act.shape, 0)
        c = jax.lax.broadcasted_iota(jnp.uint32, act.shape, 1)
        key = (seed_ref[0].astype(jnp.uint32) * jnp.uint32(0x9E3779B9)
               + (pl.program_id(0) + 1).astype(jnp.uint32) * jnp.uint32(0x85EBCA6B))
        h = _mix32(r * jnp.uint32(Cp) + c + key)
        keep = (h & jnp.uint32(1)) == jnp.uint32(1)
        act = jnp.where(keep, act, 0.0)

    o_ref[0] = act.reshape(G, P, Cp).astype(o_ref.dtype)


# ----------------------------------------------------------------------------
# Wrapper: patch building (plain-JAX glue) + pallas_call
# ----------------------------------------------------------------------------
def unet_block_forward(x, conv_w, conv_b, gamma, beta, *, block_type,
                       activation="RELU", use_dropout=True, alpha=0.2,
                       dropout_seed=0, eps=1e-5):
    assert block_type in ("UP", "DOWN")
    assert activation in ("RELU", "LEAKY RELU")
    N, C_in, H, W = x.shape

    if block_type == "DOWN":
        # Conv2d(k=4, s=2, p=1, padding_mode='reflect') via im2col
        C_out = conv_w.shape[0]                   # (C_out, C_in, 4, 4)
        H_out, W_out = H // 2, W // 2
        P, K, G = H_out * W_out, C_in * 16, 1
        x_pad = jnp.pad(x, ((0, 0), (0, 0), (1, 1), (1, 1)), mode="reflect")
        sl = []
        for kh in range(4):
            for kw in range(4):
                sl.append(x_pad[:, :, kh:kh + 2 * H_out:2, kw:kw + 2 * W_out:2])
        pt = jnp.stack(sl, axis=-1)               # (N, C_in, H_out, W_out, 16)
        patches = pt.transpose(0, 2, 3, 1, 4).reshape(N, 1, P, K)
        w_mat = conv_w.reshape(C_out, K).T.reshape(1, K, C_out)
    else:
        # ConvTranspose2d(k=4, s=2, p=1) via sub-pixel decomposition: each of the
        # 4 output parities (dy, dx) is a stride-1 conv with a 2x2 subset of taps.
        C_out = conv_w.shape[1]                   # (C_in, C_out, 4, 4)
        H_out, W_out = 2 * H, 2 * W
        P, K, G = H * W, C_in * 4, 4
        x_pad = jnp.pad(x, ((0, 0), (0, 0), (1, 1), (1, 1)))
        # parity -> (padded-input offsets, matching kernel indices)
        taps = {0: ((0, 1), (3, 1)), 1: ((1, 2), (2, 0))}
        pgroups, wgroups = [], []
        for dy in (0, 1):
            yo, kys = taps[dy]
            for dx in (0, 1):
                xo, kxs = taps[dx]
                sl, wt = [], []
                for a in range(2):
                    for b in range(2):
                        sl.append(x_pad[:, :, yo[a]:yo[a] + H, xo[b]:xo[b] + W])
                        wt.append(conv_w[:, :, kys[a], kxs[b]])   # (C_in, C_out)
                pt = jnp.stack(sl, axis=-1)       # (N, C_in, H, W, 4)
                pgroups.append(pt.transpose(0, 2, 3, 1, 4).reshape(N, P, K))
                ws = jnp.stack(wt, axis=-1)       # (C_in, C_out, 4)
                wgroups.append(ws.transpose(0, 2, 1).reshape(K, C_out))
        patches = jnp.stack(pgroups, axis=1)      # (N, 4, P, K)
        w_mat = jnp.stack(wgroups, axis=0)        # (4, K, C_out)

    # Pad K and C_out to lane-dense multiples of 128 (MXU alignment + dense stores)
    Kp = _round_up(K, 128)
    Cp = _round_up(C_out, 128)
    patches = jnp.pad(patches, ((0, 0), (0, 0), (0, 0), (0, Kp - K)))
    w_mat = jnp.pad(w_mat, ((0, 0), (0, Kp - K), (0, Cp - C_out)))

    # bf16 inputs for the MXU; f32 accumulation inside the kernel.
    patches = patches.astype(jnp.bfloat16)
    w_mat = w_mat.astype(jnp.bfloat16)

    # Fold the dropout 1/(1-p)=2 scale into the affine parameters.
    drop_scale = 2.0 if use_dropout else 1.0
    b_row = jnp.pad(conv_b.astype(jnp.float32), (0, Cp - C_out)).reshape(1, Cp)
    g_row = jnp.pad((gamma * drop_scale).astype(jnp.float32),
                    (0, Cp - C_out)).reshape(1, Cp)
    be_row = jnp.pad((beta * drop_scale).astype(jnp.float32),
                     (0, Cp - C_out)).reshape(1, Cp)
    seed = jnp.asarray([dropout_seed], dtype=jnp.int32)

    kernel = functools.partial(
        _unet_block_kernel,
        alpha=0.0 if activation == "RELU" else float(alpha),
        use_dropout=bool(use_dropout),
        eps=float(eps),
    )

    grid_spec = pltpu.PrefetchScalarGridSpec(
        num_scalar_prefetch=1,
        grid=(N,),
        in_specs=[
            pl.BlockSpec((1, G, P, Kp), lambda n, seed_ref: (n, 0, 0, 0)),
            pl.BlockSpec((G, Kp, Cp), lambda n, seed_ref: (0, 0, 0)),
            pl.BlockSpec((1, Cp), lambda n, seed_ref: (0, 0)),
            pl.BlockSpec((1, Cp), lambda n, seed_ref: (0, 0)),
            pl.BlockSpec((1, Cp), lambda n, seed_ref: (0, 0)),
        ],
        out_specs=pl.BlockSpec((1, G, P, Cp), lambda n, seed_ref: (n, 0, 0, 0)),
    )

    cost = pl.CostEstimate(
        flops=int(2 * N * G * P * Kp * Cp),
        transcendentals=int(N * Cp),
        bytes_accessed=int(patches.size * 2 + w_mat.size * 2
                           + 3 * Cp * 4 + N * G * P * Cp * 4),
    )

    out = pl.pallas_call(
        kernel,
        out_shape=jax.ShapeDtypeStruct((N, G, P, Cp), jnp.float32),
        grid_spec=grid_spec,
        compiler_params=pltpu.CompilerParams(
            dimension_semantics=("parallel",),      # batch axis -> dual TC on v7x
            vmem_limit_bytes=32 * 1024 * 1024,
        ),
        cost_estimate=cost,
    )(seed, patches, w_mat, b_row, g_row, be_row)

    out = out[..., :C_out]                          # drop channel padding
    if block_type == "DOWN":
        return out.reshape(N, H_out, W_out, C_out).transpose(0, 3, 1, 2)
    # UP: interleave the 4 parity groups back into (N, C_out, 2H, 2W)
    out = out.reshape(N, 2, 2, H, W, C_out)         # (n, dy, dx, qy, qx, co)
    out = out.transpose(0, 5, 3, 1, 4, 2)           # (n, co, qy, dy, qx, dx)
    return out.reshape(N, C_out, H_out, W_out)


# ----------------------------------------------------------------------------
# Pure-JAX reference (dropout disabled) for correctness checking
# ----------------------------------------------------------------------------
def _reference(x, conv_w, conv_b, gamma, beta, block_type, alpha, eps=1e-5):
    if block_type == "DOWN":
        xp = jnp.pad(x, ((0, 0), (0, 0), (1, 1), (1, 1)), mode="reflect")
        y = jax.lax.conv_general_dilated(
            xp, conv_w, (2, 2), "VALID",
            dimension_numbers=("NCHW", "OIHW", "NCHW"),
            precision=jax.lax.Precision.HIGHEST)
    else:
        w_eq = jnp.flip(jnp.transpose(conv_w, (1, 0, 2, 3)), axis=(2, 3))
        y = jax.lax.conv_general_dilated(
            x, w_eq, (1, 1), [(2, 2), (2, 2)], lhs_dilation=(2, 2),
            dimension_numbers=("NCHW", "OIHW", "NCHW"),
            precision=jax.lax.Precision.HIGHEST)
    y = y + conv_b[None, :, None, None]
    mean = y.mean(axis=(2, 3), keepdims=True)
    var = ((y - mean) ** 2).mean(axis=(2, 3), keepdims=True)
    yn = (y - mean) * jax.lax.rsqrt(var + eps)
    yn = yn * gamma[None, :, None, None] + beta[None, :, None, None]
    return jnp.where(yn > 0, yn, alpha * yn)


if __name__ == "__main__":
    key = jax.random.PRNGKey(0)
    N, C_in, C_out, H, W = 2, 4, 8, 16, 16

    k_x, k_wd, k_wu, k_b, k_g, k_be = jax.random.split(key, 6)
    x = jax.random.normal(k_x, (N, C_in, H, W), dtype=jnp.float32)
    w_down = 0.1 * jax.random.normal(k_wd, (C_out, C_in, 4, 4), dtype=jnp.float32)
    w_up = 0.1 * jax.random.normal(k_wu, (C_in, C_out, 4, 4), dtype=jnp.float32)
    b = 0.1 * jax.random.normal(k_b, (C_out,), dtype=jnp.float32)
    gamma = 1.0 + 0.1 * jax.random.normal(k_g, (C_out,), dtype=jnp.float32)
    beta = 0.1 * jax.random.normal(k_be, (C_out,), dtype=jnp.float32)

    # Round-trip conv operands through bf16 so the bf16-MXU kernel and the f32
    # reference see bit-identical inputs (the comparison isolates kernel math).
    x_q = x.astype(jnp.bfloat16).astype(jnp.float32)
    w_down_q = w_down.astype(jnp.bfloat16).astype(jnp.float32)
    w_up_q = w_up.astype(jnp.bfloat16).astype(jnp.float32)

    # ---- DOWN block (Conv2d + InstanceNorm + LeakyReLU), dropout off ----
    out_down = unet_block_forward(
        x_q, w_down_q, b, gamma, beta, block_type="DOWN",
        activation="LEAKY RELU", use_dropout=False, alpha=0.2)
    ref_down = _reference(x_q, w_down_q, b, gamma, beta, "DOWN", alpha=0.2)
    assert out_down.shape == (N, C_out, H // 2, W // 2)
    assert jnp.allclose(out_down, ref_down, atol=2e-3, rtol=2e-3)

    # ---- UP block (ConvTranspose2d + InstanceNorm + ReLU), dropout off ----
    out_up = unet_block_forward(
        x_q, w_up_q, b, gamma, beta, block_type="UP",
        activation="RELU", use_dropout=False)
    ref_up = _reference(x_q, w_up_q, b, gamma, beta, "UP", alpha=0.0)
    assert out_up.shape == (N, C_out, 2 * H, 2 * W)
    assert jnp.allclose(out_up, ref_up, atol=2e-3, rtol=2e-3)

    # ---- full forward with dropout enabled (training-mode semantics) ----
    out_drop = unet_block_forward(
        x_q, w_down_q, b, gamma, beta, block_type="DOWN",
        activation="LEAKY RELU", use_dropout=True, alpha=0.2, dropout_seed=123)
    assert out_drop.shape == (N, C_out, H // 2, W // 2)

    jax.block_until_ready((out_down, out_up, out_drop))
    print("KERNEL_OK")
</pallas_src>

<mosaic_0001>
module attributes {stable_mosaic.version = 11 : i64} {
  func.func @_unet_block_kernel(%arg0: i32, %arg1: memref<1xi32, #tpu.memory_space<smem>>, %arg2: memref<1x1x64x128xbf16, #tpu.memory_space<vmem>>, %arg3: memref<1x128x128xbf16, #tpu.memory_space<vmem>>, %arg4: memref<1x128xf32, #tpu.memory_space<vmem>>, %arg5: memref<1x128xf32, #tpu.memory_space<vmem>>, %arg6: memref<1x128xf32, #tpu.memory_space<vmem>>, %arg7: memref<1x1x64x128xf32, #tpu.memory_space<vmem>>) attributes {dimension_semantics = [#tpu.dimension_semantics<parallel>], iteration_bounds = array<i64: 2>, scalar_prefetch = 1 : i64, scratch_operands = 0 : i64, tpu.core_type = #tpu.core_type<tc>, window_params = [{transform_indices = @transform_0, window_bounds = array<i64: 1, 1, 64, 128>}, {pipeline_mode = #tpu.pipeline_mode<synchronous>, transform_indices = @transform_1, window_bounds = array<i64: 1, 128, 128>}, {pipeline_mode = #tpu.pipeline_mode<synchronous>, transform_indices = @transform_2, window_bounds = array<i64: 1, 128>}, {pipeline_mode = #tpu.pipeline_mode<synchronous>, transform_indices = @transform_3, window_bounds = array<i64: 1, 128>}, {pipeline_mode = #tpu.pipeline_mode<synchronous>, transform_indices = @transform_4, window_bounds = array<i64: 1, 128>}, {transform_indices = @transform_5, window_bounds = array<i64: 1, 1, 64, 128>}]} {
    %c0 = arith.constant 0 : index
    %c0_0 = arith.constant 0 : index
    %c0_1 = arith.constant 0 : index
    %c0_2 = arith.constant 0 : index
    %0 = vector.load %arg2[%c0, %c0_0, %c0_1, %c0_2] : memref<1x1x64x128xbf16, #tpu.memory_space<vmem>>, vector<1x1x64x128xbf16>
    %1 = vector.shape_cast %0 : vector<1x1x64x128xbf16> to vector<1x64x128xbf16>
    %c0_3 = arith.constant 0 : index
    %c0_4 = arith.constant 0 : index
    %c0_5 = arith.constant 0 : index
    %2 = vector.load %arg3[%c0_3, %c0_4, %c0_5] : memref<1x128x128xbf16, #tpu.memory_space<vmem>>, vector<1x128x128xbf16>
    "tpu.trace_start"() <{level = 10 : i32, message = "gpk,gkc->gpc"}> : () -> ()
    %cst = arith.constant dense<0.000000e+00> : vector<1x64x128xf32>
    %3 = tpu.matmul %1, %2, %cst {dimension_numbers = #tpu.dot_dimension_numbers<[2], [1], [1], [2], [0, 0, 0, 1, 1, 2], [0], [0]>} : vector<1x64x128xbf16>, vector<1x128x128xbf16>, vector<1x64x128xf32> -> vector<1x64x128xf32>
    "tpu.trace_stop"() : () -> ()
    %4 = vector.shape_cast %3 : vector<1x64x128xf32> to vector<64x128xf32>
    %c0_6 = arith.constant 0 : index
    %c0_7 = arith.constant 0 : index
    %5 = vector.load %arg4[%c0_6, %c0_7] : memref<1x128xf32, #tpu.memory_space<vmem>>, vector<1x128xf32>
    %6 = vector.broadcast %5 : vector<1x128xf32> to vector<64x128xf32>
    %7 = arith.addf %4, %6 : vector<64x128xf32>
    %cst_8 = arith.constant dense<0.000000e+00> : vector<128xf32>
    %8 = vector.multi_reduction <add>, %7, %cst_8 [0] : vector<64x128xf32> to vector<128xf32>
    %9 = vector.shape_cast %8 : vector<128xf32> to vector<1x128xf32>
    %10 = arith.mulf %7, %7 : vector<64x128xf32>
    %cst_9 = arith.constant dense<0.000000e+00> : vector<128xf32>
    %11 = vector.multi_reduction <add>, %10, %cst_9 [0] : vector<64x128xf32> to vector<128xf32>
    %12 = vector.shape_cast %11 : vector<128xf32> to vector<1x128xf32>
    %cst_10 = arith.constant 1.562500e-02 : f32
    %13 = vector.broadcast %cst_10 : f32 to vector<1x128xf32>
    %14 = arith.mulf %9, %13 : vector<1x128xf32>
    %cst_11 = arith.constant 1.562500e-02 : f32
    %15 = vector.broadcast %cst_11 : f32 to vector<1x128xf32>
    %16 = arith.mulf %12, %15 : vector<1x128xf32>
    %17 = arith.mulf %14, %14 : vector<1x128xf32>
    %18 = arith.subf %16, %17 : vector<1x128xf32>
    %cst_12 = arith.constant 0.000000e+00 : f32
    %19 = vector.broadcast %cst_12 : f32 to vector<1x128xf32>
    %20 = arith.maximumf %18, %19 : vector<1x128xf32>
    %cst_13 = arith.constant 9.99999974E-6 : f32
    %21 = vector.broadcast %cst_13 : f32 to vector<1x128xf32>
    %22 = arith.addf %20, %21 : vector<1x128xf32>
    %23 = math.rsqrt %22 : vector<1x128xf32>
    %c0_14 = arith.constant 0 : index
    %c0_15 = arith.constant 0 : index
    %24 = vector.load %arg5[%c0_14, %c0_15] : memref<1x128xf32, #tpu.memory_space<vmem>>, vector<1x128xf32>
    %25 = arith.mulf %23, %24 : vector<1x128xf32>
    %26 = vector.broadcast %14 : vector<1x128xf32> to vector<64x128xf32>
    %27 = arith.subf %7, %26 : vector<64x128xf32>
    %28 = vector.broadcast %25 : vector<1x128xf32> to vector<64x128xf32>
    %29 = arith.mulf %27, %28 : vector<64x128xf32>
    %c0_16 = arith.constant 0 : index
    %c0_17 = arith.constant 0 : index
    %30 = vector.load %arg6[%c0_16, %c0_17] : memref<1x128xf32, #tpu.memory_space<vmem>>, vector<1x128xf32>
    %31 = vector.broadcast %30 : vector<1x128xf32> to vector<64x128xf32>
    %32 = arith.addf %29, %31 : vector<64x128xf32>
    %cst_18 = arith.constant 0.000000e+00 : f32
    %33 = vector.broadcast %cst_18 : f32 to vector<64x128xf32>
    %34 = arith.cmpf ogt, %32, %33 : vector<64x128xf32>
    %cst_19 = arith.constant 2.000000e-01 : f32
    %35 = vector.broadcast %cst_19 : f32 to vector<64x128xf32>
    %36 = arith.mulf %35, %32 : vector<64x128xf32>
    %37 = arith.select %34, %32, %36 : vector<64x128xi1>, vector<64x128xf32>
    %38 = vector.shape_cast %37 : vector<64x128xf32> to vector<1x64x128xf32>
    %c0_20 = arith.constant 0 : index
    %c0_21 = arith.constant 0 : index
    %c0_22 = arith.constant 0 : index
    %c0_23 = arith.constant 0 : index
    %39 = vector.load %arg7[%c0_20, %c0_21, %c0_22, %c0_23] : memref<1x1x64x128xf32, #tpu.memory_space<vmem>>, vector<1x1x64x128xf32>
    %40 = vector.shape_cast %39 : vector<1x1x64x128xf32> to vector<1x64x128xf32>
    %41 = vector.shape_cast %38 : vector<1x64x128xf32> to vector<1x1x64x128xf32>
    tpu.vector_store %arg7[%c0_20, %c0_21, %c0_22, %c0_23], %41 {strides = array<i32>} : memref<1x1x64x128xf32, #tpu.memory_space<vmem>>, vector<1x1x64x128xf32>,
    return
  }
  func.func @transform_0(%arg0: i32, %arg1: memref<1xi32, #tpu.memory_space<smem>>) -> (i32, i32, i32, i32) {
    %c0_i32 = arith.constant 0 : i32
    %c0_i32_0 = arith.constant 0 : i32
    %c0_i32_1 = arith.constant 0 : i32
    %c0_i32_2 = arith.constant 0 : i32
    return %arg0, %c0_i32, %c0_i32_0, %c0_i32_1 : i32, i32, i32, i32
  }
  func.func @transform_1(%arg0: i32, %arg1: memref<1xi32, #tpu.memory_space<smem>>) -> (i32, i32, i32) {
    %c0_i32 = arith.constant 0 : i32
    %c0_i32_0 = arith.constant 0 : i32
    %c0_i32_1 = arith.constant 0 : i32
    %c0_i32_2 = arith.constant 0 : i32
    return %c0_i32, %c0_i32_0, %c0_i32_1 : i32, i32, i32
  }
  func.func @transform_2(%arg0: i32, %arg1: memref<1xi32, #tpu.memory_space<smem>>) -> (i32, i32) {
    %c0_i32 = arith.constant 0 : i32
    %c0_i32_0 = arith.constant 0 : i32
    %c0_i32_1 = arith.constant 0 : i32
    return %c0_i32, %c0_i32_0 : i32, i32
  }
  func.func @transform_3(%arg0: i32, %arg1: memref<1xi32, #tpu.memory_space<smem>>) -> (i32, i32) {
    %c0_i32 = arith.constant 0 : i32
    %c0_i32_0 = arith.constant 0 : i32
    %c0_i32_1 = arith.constant 0 : i32
    return %c0_i32, %c0_i32_0 : i32, i32
  }
  func.func @transform_4(%arg0: i32, %arg1: memref<1xi32, #tpu.memory_space<smem>>) -> (i32, i32) {
    %c0_i32 = arith.constant 0 : i32
    %c0_i32_0 = arith.constant 0 : i32
    %c0_i32_1 = arith.constant 0 : i32
    return %c0_i32, %c0_i32_0 : i32, i32
  }
  func.func @transform_5(%arg0: i32, %arg1: memref<1xi32, #tpu.memory_space<smem>>) -> (i32, i32, i32, i32) {
    %c0_i32 = arith.constant 0 : i32
    %c0_i32_0 = arith.constant 0 : i32
    %c0_i32_1 = arith.constant 0 : i32
    %c0_i32_2 = arith.constant 0 : i32
    return %arg0, %c0_i32, %c0_i32_0, %c0_i32_1 : i32, i32, i32, i32
  }
}

</mosaic_0001>

<llo_original>
// kernel: tpu_custom_call.1
$region0: #{tpu_custom_call.1}
  #allocation0 [shape = 'u32[]', space=smem, size = 0x4, offset = 0x4, fixed_abs, tag = 'smem constant byte address 0x4 - core index']
  #allocation1 [shape = 'u32[144,128]{1,0:T(1,128)}', space=vmem, size = 0x12000, scoped, tag = 'internal scratch']
  #allocation2 [shape = 's32[1]{0}', space=sflag, size = 0x4, scoped, tag = 'scoped memory for tpu_custom_call.1']
  #allocation3 [shape = 's32[1]{0:T(128)S(6)}', space=smem, size = 0x200, scoped, tag = 'prefetched SMEM operand 0']
  %s0 = inlined_call_operand.<no memory space> [shape: s32[1], index: 0, kind: input, shape index: {}]
  %s1 = inlined_call_operand.hbm [shape: bf16[2,1,64,128], index: 1, kind: input, shape index: {}]
  %s2 = inlined_call_operand.hbm [shape: bf16[1,128,128], index: 2, kind: input, shape index: {}]
  %s3 = inlined_call_operand.vmem [shape: f32[1,128], index: 3, kind: input, shape index: {}]
  %s4 = inlined_call_operand.vmem [shape: f32[1,128], index: 4, kind: input, shape index: {}]
  %s5 = inlined_call_operand.vmem [shape: f32[1,128], index: 5, kind: input, shape index: {}]
  %s6 = inlined_call_operand.hbm [shape: f32[2,1,64,128], index: 6, kind: output, shape index: {}]
  %s7 = sld [smem:[#allocation0]]
  $region61: #{tpu_custom_call.1} parent=0
    _
  %s9 = ssub.s32 1, %s7
  %s10 = scalar_select 0, %s9, %s7
  %11 = sst [smem:[#allocation3]] %s0
  $region1: #{tpu_custom_call.1} parent=0
    #allocation4 [shape = 'u8[32768]{0}', space=vmem, size = 0x8000, scoped, tag = 'input window, operand 1']
    #allocation5 [shape = 's32[2]{0}', space=sflag, size = 0x8, scoped, tag = 'scoped memory for tpu_custom_call.1']
    #allocation6 [shape = 's32[2]{0}', space=sflag, size = 0x8, scoped, tag = 'scoped memory for tpu_custom_call.1']
    #allocation7 [shape = 'u8[32768]{0}', space=vmem, size = 0x8000, scoped, tag = 'input window, operand 2, single buffered']
    #allocation8 [shape = 's32[1]{0}', space=sflag, size = 0x4, scoped, tag = 'scoped memory for tpu_custom_call.1']
    #allocation9 [shape = 'u8[65536]{0}', space=vmem, size = 0x10000, scoped, tag = 'output window, operand 0']
    %12 = vsyncpa [#allocation5], 0
    %s13 = scalar_lea.sflag [#allocation5], 1
    %14 = vsyncpa %s13, 0
    %15 = vsyncpa [#allocation8], 0
    %16 = vsyncpa [#allocation6], 0
    %s17 = scalar_lea.sflag [#allocation6], 1
    %18 = vsyncpa %s17, 0
    loop: start=0, step=1, limit=4
    $region2: #{tpu_custom_call.1} parent=1 // loop_pre_header
      _
    $region3: #{tpu_custom_call.1} parent=1 // loop_header
      %s20 = sphi 0, %s24
      %p21 = scmp.ge.s32.totalorder %s20, 4
      %s30 = sphi 0, %s32
      %s33 = sphi 0, %s30
      %s34 = sphi 0, %s33
      %s50 = sphi 0, %s34
      %s54 = sphi 0, %s54
      %s56 = sphi 0, %s54
      %s57 = sphi 0, %s56
      %s71 = sphi 0, %s57
      %s75 = sphi 0, %s75
      %s77 = sphi 0, %s75
      %s78 = sphi 0, %s77
      %s92 = sphi 0, %s78
      %s96 = sphi 0, %s96
      %s98 = sphi 0, %s96
      %s99 = sphi 0, %s98
      %s113 = sphi 0, %s99
      %s117 = sphi 0, %s117
      %s119 = sphi 0, %s117
      %s120 = sphi 0, %s119
      %s134 = sphi 0, %s120
      %s140 = sphi 0, %s142
      %s143 = sphi 0, %s140
      %s144 = sphi 0, %s143
      %s160 = sphi 0, %s144
    $region4: #{tpu_custom_call.1} parent=1 // loop_header_branch
      %23 = sbr.rel (%p21) target = $region8
    $region5: #{tpu_custom_call.1} parent=1 // loop_body
      %s25 = ssub.s32 %s20, 1
      %s26 = ssub.s32 %s20, 2
      %s27 = sadd.s32 %s20, 1
      %s28 = ssub.s32 %s20, %s27
      %p29 = scmp.eq.s32.totalorder %s28, 0
      %s31 = sadd.s32 %s30, 1
      %s32 = scalar_select %p29, %s30, %s31
      %p35 = pneg %p29
      %p36 = scmp.eq.s32.totalorder %s20, 1
      %p37 = por %p35, %p36
      %p38 = scmp.ne.s32.totalorder %s30, %s33
      %p39 = scmp.eq.s32.totalorder %s20, 0
      %p40 = por %p38, %p39
      %p41 = scmp.ne.s32.totalorder %s30, %s33
      %p42 = scmp.eq.s32.totalorder %s25, 1
      %p43 = por %p41, %p42
      %p44 = scmp.ne.s32.totalorder %s33, %s34
      %p45 = scmp.eq.s32.totalorder %s25, 0
      %p46 = por %p44, %p45
      %p47 = scmp.ne.s32.totalorder %s33, %s34
      %p48 = scmp.eq.s32.totalorder %s26, 1
      %p49 = por %p47, %p48
      %p51 = scmp.ne.s32.totalorder %s34, %s50
      %p52 = scmp.eq.s32.totalorder %s26, 0
      %p53 = por %p51, %p52
      %s55 = sadd.s32 %s54, 1
      %p58 = scmp.eq.s32.totalorder %s20, 1
      %p59 = scmp.ne.s32.totalorder %s54, %s56
      %p60 = scmp.eq.s32.totalorder %s20, 0
      %p61 = por %p59, %p60
      %p62 = scmp.ne.s32.totalorder %s54, %s56
      %p63 = scmp.eq.s32.totalorder %s25, 1
      %p64 = por %p62, %p63
      %p65 = scmp.ne.s32.totalorder %s56, %s57
      %p66 = scmp.eq.s32.totalorder %s25, 0
      %p67 = por %p65, %p66
      %p68 = scmp.ne.s32.totalorder %s56, %s57
      %p69 = scmp.eq.s32.totalorder %s26, 1
      %p70 = por %p68, %p69
      %p72 = scmp.ne.s32.totalorder %s57, %s71
      %p73 = scmp.eq.s32.totalorder %s26, 0
      %p74 = por %p72, %p73
      %s76 = sadd.s32 %s75, 1
      %p79 = scmp.eq.s32.totalorder %s20, 1
      %p80 = scmp.ne.s32.totalorder %s75, %s77
      %p81 = scmp.eq.s32.totalorder %s20, 0
      %p82 = por %p80, %p81
      %p83 = scmp.ne.s32.totalorder %s75, %s77
      %p84 = scmp.eq.s32.totalorder %s25, 1
      %p85 = por %p83, %p84
      %p86 = scmp.ne.s32.totalorder %s77, %s78
      %p87 = scmp.eq.s32.totalorder %s25, 0
      %p88 = por %p86, %p87
      %p89 = scmp.ne.s32.totalorder %s77, %s78
      %p90 = scmp.eq.s32.totalorder %s26, 1
      %p91 = por %p89, %p90
      %p93 = scmp.ne.s32.totalorder %s78, %s92
      %p94 = scmp.eq.s32.totalorder %s26, 0
      %p95 = por %p93, %p94
      %s97 = sadd.s32 %s96, 1
      %p100 = scmp.eq.s32.totalorder %s20, 1
      %p101 = scmp.ne.s32.totalorder %s96, %s98
      %p102 = scmp.eq.s32.totalorder %s20, 0
      %p103 = por %p101, %p102
      %p104 = scmp.ne.s32.totalorder %s96, %s98
      %p105 = scmp.eq.s32.totalorder %s25, 1
      %p106 = por %p104, %p105
      %p107 = scmp.ne.s32.totalorder %s98, %s99
      %p108 = scmp.eq.s32.totalorder %s25, 0
      %p109 = por %p107, %p108
      %p110 = scmp.ne.s32.totalorder %s98, %s99
      %p111 = scmp.eq.s32.totalorder %s26, 1
      %p112 = por %p110, %p111
      %p114 = scmp.ne.s32.totalorder %s99, %s113
      %p115 = scmp.eq.s32.totalorder %s26, 0
      %p116 = por %p114, %p115
      %s118 = sadd.s32 %s117, 1
      %p121 = scmp.eq.s32.totalorder %s20, 1
      %p122 = scmp.ne.s32.totalorder %s117, %s119
      %p123 = scmp.eq.s32.totalorder %s20, 0
      %p124 = por %p122, %p123
      %p125 = scmp.ne.s32.totalorder %s117, %s119
      %p126 = scmp.eq.s32.totalorder %s25, 1
      %p127 = por %p125, %p126
      %p128 = scmp.ne.s32.totalorder %s119, %s120
      %p129 = scmp.eq.s32.totalorder %s25, 0
      %p130 = por %p128, %p129
      %p131 = scmp.ne.s32.totalorder %s119, %s120
      %p132 = scmp.eq.s32.totalorder %s26, 1
      %p133 = por %p131, %p132
      %p135 = scmp.ne.s32.totalorder %s120, %s134
      %p136 = scmp.eq.s32.totalorder %s26, 0
      %p137 = por %p135, %p136
      %s138 = ssub.s32 %s20, %s27
      %p139 = scmp.eq.s32.totalorder %s138, 0
      %s141 = sadd.s32 %s140, 1
      %s142 = scalar_select %p139, %s140, %s141
      %p145 = pneg %p139
      %p146 = scmp.eq.s32.totalorder %s20, 1
      %p147 = por %p145, %p146
      %p148 = scmp.ne.s32.totalorder %s140, %s143
      %p149 = scmp.eq.s32.totalorder %s20, 0
      %p150 = por %p148, %p149
      %p151 = scmp.ne.s32.totalorder %s140, %s143
      %p152 = scmp.eq.s32.totalorder %s25, 1
      %p153 = por %p151, %p152
      %p154 = scmp.ne.s32.totalorder %s143, %s144
      %p155 = scmp.eq.s32.totalorder %s25, 0
      %p156 = por %p154, %p155
      %p157 = scmp.ne.s32.totalorder %s143, %s144
      %p158 = scmp.eq.s32.totalorder %s26, 1
      %p159 = por %p157, %p158
      %p161 = scmp.ne.s32.totalorder %s144, %s160
      %p162 = scmp.eq.s32.totalorder %s26, 0
      %p163 = por %p161, %p162
      %p164 = scmp.le.s32.totalorder 1, %s20
      %p165 = scmp.lt.s32.totalorder %s20, 3
      %p166 = pnand %p164, %p165
      %p167 = pneg %p166
      // Predicated region
      $region9: #{tpu_custom_call.1} parent=5 // pred_check
        _
      $region10: #{tpu_custom_call.1} parent=5 // pred_check_branch
        %169 = sbr.rel (%p166) target = $region12
      $region11: #{tpu_custom_call.1} parent=5 // pred_region
        %s170 = ssub.s32 %s20, 1
        // Predicated region
        $region13: #{tpu_custom_call.1} parent=11 // pred_check
          %p171 = pneg %p67
        $region14: #{tpu_custom_call.1} parent=11 // pred_check_branch
          %173 = sbr.rel (%p171) target = $region16
        $region15: #{tpu_custom_call.1} parent=11 // pred_region
          %s175 = ssub.s32 1024, 1024
          %176 = vsyncadd [#allocation8], %s175
          %s177 = sshll.u32 [#allocation7], 4
          %s178 = int_to_ptr.vmem [resolvable:$true] %s177
          %183 = dma.hbm_to_vmem [thread:$0]  %s2, 1024, %s178, [#allocation8], 64, 64, 4
        $region16: #{tpu_custom_call.1} parent=11 // pred_fallthru
          _
        // Predicated region
        $region17: #{tpu_custom_call.1} parent=11 // pred_check
          %p184 = pneg %p88
        $region18: #{tpu_custom_call.1} parent=11 // pred_check_branch
          %186 = sbr.rel (%p184) target = $region20
        $region19: #{tpu_custom_call.1} parent=11 // pred_region
          _
        $region20: #{tpu_custom_call.1} parent=11 // pred_fallthru
          _
        // Predicated region
        $region21: #{tpu_custom_call.1} parent=11 // pred_check
          %p187 = pneg %p109
        $region22: #{tpu_custom_call.1} parent=11 // pred_check_branch
          %189 = sbr.rel (%p187) target = $region24
        $region23: #{tpu_custom_call.1} parent=11 // pred_region
          _
        $region24: #{tpu_custom_call.1} parent=11 // pred_fallthru
          _
        // Predicated region
        $region25: #{tpu_custom_call.1} parent=11 // pred_check
          %p190 = pneg %p130
        $region26: #{tpu_custom_call.1} parent=11 // pred_check_branch
          %192 = sbr.rel (%p190) target = $region28
        $region27: #{tpu_custom_call.1} parent=11 // pred_region
          _
        $region28: #{tpu_custom_call.1} parent=11 // pred_fallthru
          _
      $region12: #{tpu_custom_call.1} parent=5 // pred_fallthru
        _
      %p193 = scmp.lt.s32.totalorder %s20, 2
      // Predicated region
      $region29: #{tpu_custom_call.1} parent=5 // pred_check
        %p194 = pneg %p193
      $region30: #{tpu_custom_call.1} parent=5 // pred_check_branch
        %196 = sbr.rel (%p194) target = $region32
      $region31: #{tpu_custom_call.1} parent=5 // pred_region
        // Predicated region
        $region33: #{tpu_custom_call.1} parent=31 // pred_check
          %p197 = pneg %p40
        $region34: #{tpu_custom_call.1} parent=31 // pred_check_branch
          %199 = sbr.rel (%p197) target = $region36
        $region35: #{tpu_custom_call.1} parent=31 // pred_region
          %s200 = sand.u32 %s30, 1
          %s201 = scalar_lea.sflag [#allocation5], %s200
          %s202 = sand.u32 %s30, 1
          %s203 = smul.addr %s202, 32
          %s204 = scalar_lea.vmem [#allocation4], %s203
          %s206 = ssub.s32 512, 512
          %207 = vsyncadd %s201, %s206
          %s208 = smul.addr %s20, 8
          %s209 = smul.addr %s208, 64
          %s210 = scalar_lea.hbm %s1, %s209
          %s211 = sshll.u32 %s204, 4
          %s212 = int_to_ptr.vmem [resolvable:$true] %s211
          %217 = dma.hbm_to_vmem [thread:$0]  %s210, 512, %s212, %s201, 64, 64, 4
        $region36: #{tpu_custom_call.1} parent=31 // pred_fallthru
          _
      $region32: #{tpu_custom_call.1} parent=5 // pred_fallthru
        _
      %p218 = scmp.le.s32.totalorder 1, %s20
      %p219 = scmp.lt.s32.totalorder %s20, 3
      %p220 = pnand %p218, %p219
      %p221 = pneg %p220
      // Predicated region
      $region37: #{tpu_custom_call.1} parent=5 // pred_check
        _
      $region38: #{tpu_custom_call.1} parent=5 // pred_check_branch
        %223 = sbr.rel (%p220) target = $region40
      $region39: #{tpu_custom_call.1} parent=5 // pred_region
        %s224 = ssub.s32 %s20, 1
        %s225 = sand.u32 %s33, 1
        %s226 = scalar_lea.sflag [#allocation5], %s225
        %s227 = sand.u32 %s33, 1
        %s228 = smul.addr %s227, 32
        %s229 = scalar_lea.vmem [#allocation4], %s228
        // Predicated region
        $region41: #{tpu_custom_call.1} parent=39 // pred_check
          %p230 = pneg %p46
        $region42: #{tpu_custom_call.1} parent=39 // pred_check_branch
          %232 = sbr.rel (%p230) target = $region44
        $region43: #{tpu_custom_call.1} parent=39 // pred_region
          %233 = dma.done %s226, 512
        $region44: #{tpu_custom_call.1} parent=39 // pred_fallthru
          _
        // Predicated region
        $region45: #{tpu_custom_call.1} parent=39 // pred_check
          %p234 = pneg %p67
        $region46: #{tpu_custom_call.1} parent=39 // pred_check_branch
          %236 = sbr.rel (%p234) target = $region48
        $region47: #{tpu_custom_call.1} parent=39 // pred_region
          %237 = dma.done [#allocation8], 1024
        $region48: #{tpu_custom_call.1} parent=39 // pred_fallthru
          _
        %s238 = sand.u32 %s33, 1
        %s239 = scalar_lea.sflag [#allocation5], %s238
        %s240 = sand.u32 %s33, 1
        %s241 = smul.addr %s240, 32
        %s242 = scalar_lea.vmem [#allocation4], %s241
        %p243 = pneg %p46
        %p244 = pneg %p43
        %p245 = pneg %p67
        %p246 = pneg %p64
        %p247 = pneg %p88
        %p248 = pneg %p85
        %p249 = pneg %p109
        %p250 = pneg %p106
        %p251 = pneg %p130
        %p252 = pneg %p127
        %p253 = pneg %p156
        %p254 = pneg %p153
        %s255 = sand.u32 %s143, 1
        %s256 = scalar_lea.sflag [#allocation6], %s255
        %s257 = sand.u32 %s143, 1
        %s258 = smul.addr %s257, 64
        %s259 = scalar_lea.vmem [#allocation9], %s258
        %v261 = vld [vmem:[%s229] sm:$0xf]
        %v262 = vld [vmem:[%s229 + $0x4] sm:$0xf]
        %v263 = vld [vmem:[%s229 + $0x8] sm:$0xf]
        %v264 = vld [vmem:[%s229 + $0xc] sm:$0xf]
        %v265 = vld [vmem:[%s229 + $0x10] sm:$0xf]
        %v266 = vld [vmem:[%s229 + $0x14] sm:$0xf]
        %v267 = vld [vmem:[%s229 + $0x18] sm:$0xf]
        %v268 = vld [vmem:[%s229 + $0x1c] sm:$0xf]
        %v269 = vld [vmem:[#allocation7] sm:$0xf]
        %v270 = vld [vmem:[#allocation7 + $0x4] sm:$0xf]
        %v271 = vld [vmem:[#allocation7 + $0x8] sm:$0xf]
        %v272 = vld [vmem:[#allocation7 + $0xc] sm:$0xf]
        %v273 = vld [vmem:[#allocation7 + $0x10] sm:$0xf]
        %v274 = vld [vmem:[#allocation7 + $0x14] sm:$0xf]
        %v275 = vld [vmem:[#allocation7 + $0x18] sm:$0xf]
        %v276 = vld [vmem:[#allocation7 + $0x1c] sm:$0xf]
        %v277 = vld [vmem:[#allocation7 + $0x20] sm:$0xf]
        %v278 = vld [vmem:[#allocation7 + $0x24] sm:$0xf]
        %v279 = vld [vmem:[#allocation7 + $0x28] sm:$0xf]
        %v280 = vld [vmem:[#allocation7 + $0x2c] sm:$0xf]
        %v281 = vld [vmem:[#allocation7 + $0x30] sm:$0xf]
        %v282 = vld [vmem:[#allocation7 + $0x34] sm:$0xf]
        %v283 = vld [vmem:[#allocation7 + $0x38] sm:$0xf]
        %v284 = vld [vmem:[#allocation7 + $0x3c] sm:$0xf]
        %v285 = vld [vmem:[%s3] sm:$0x1]
        %v287 = vlaneseq
        %v288 = vshrl.u32 %v287, 7
        %v289 = vsub.s32 0, %v288
        %v290 = vrot.slane %v285, %v289
        %v300 = vunpack.c.l.b16 %v261
        %v301 = vunpack.c.l.b16 %v262
        %v302 = vunpack.c.l.b16 %v263
        %v303 = vunpack.c.l.b16 %v264
        %v304 = vunpack.c.l.b16 %v265
        %v305 = vunpack.c.l.b16 %v266
        %v306 = vunpack.c.l.b16 %v267
        %v307 = vunpack.c.l.b16 %v268
        %v308 = vpack.c.b16 %v301, %v300
        %v309 = vpack.c.b16 %v303, %v302
        %v310 = vpack.c.b16 %v305, %v304
        %v311 = vpack.c.b16 %v307, %v306
        %v332 = vunpack.c.l.b16 %v269
        %v333 = vunpack.c.l.b16 %v270
        %v334 = vunpack.c.l.b16 %v271
        %v335 = vunpack.c.l.b16 %v272
        %v336 = vunpack.c.l.b16 %v273
        %v337 = vunpack.c.l.b16 %v274
        %v338 = vunpack.c.l.b16 %v275
        %v339 = vunpack.c.l.b16 %v276
        %v340 = vunpack.c.l.b16 %v277
        %v341 = vunpack.c.l.b16 %v278
        %v342 = vunpack.c.l.b16 %v279
        %v343 = vunpack.c.l.b16 %v280
        %v344 = vunpack.c.l.b16 %v281
        %v345 = vunpack.c.l.b16 %v282
        %v346 = vunpack.c.l.b16 %v283
        %v347 = vunpack.c.l.b16 %v284
        %v348 = vpack.c.b16 %v333, %v332
        %v349 = vpack.c.b16 %v335, %v334
        %v350 = vpack.c.b16 %v337, %v336
        %v351 = vpack.c.b16 %v339, %v338
        %v352 = vpack.c.b16 %v341, %v340
        %v353 = vpack.c.b16 %v343, %v342
        %v354 = vpack.c.b16 %v345, %v344
        %v355 = vpack.c.b16 %v347, %v346
        %364 = vmatprep.subr.bf16.mxu0 0
        %365 = vmatpush1.bf16.msra.mxu0 %v355
        %366 = vmatprep.subr.bf16.mxu0 0
        %367 = vmatpush1.bf16.msra.mxu0 %v354
        %368 = vmatprep.subr.bf16.mxu0 0
        %369 = vmatpush1.bf16.msra.mxu0 %v353
        %370 = vmatprep.subr.bf16.mxu0 0
        %371 = vmatpush1.bf16.msra.mxu0 %v352
        %372 = vmatprep.subr.bf16.mxu0 0
        %373 = vmatpush1.bf16.msra.mxu0 %v351
        %374 = vmatprep.subr.bf16.mxu0 0
        %375 = vmatpush1.bf16.msra.mxu0 %v350
        %376 = vmatprep.subr.bf16.mxu0 0
        %377 = vmatpush1.bf16.msra.mxu0 %v349
        %378 = vmatprep.subr.bf16.mxu0 0
        %379 = vmatpush1.bf16.msra.mxu0 %v348
        %380 = vmatprep.subr.bf16.mxu0 0
        %381 = vmatpush2.bf16.msra.mxu0 0
        %382 = vmatprep.subr.bf16.mxu0 0
        %383 = vmatpush2.bf16.msra.mxu0 0
        %384 = vmatprep.subr.bf16.mxu0 0
        %385 = vmatpush2.bf16.msra.mxu0 0
        %386 = vmatprep.subr.bf16.mxu0 0
        %387 = vmatpush2.bf16.msra.mxu0 0
        %388 = vmatprep.subr.bf16.mxu0 0
        %389 = vmatpush2.bf16.msra.mxu0 0
        %390 = vmatprep.subr.bf16.mxu0 0
        %391 = vmatpush2.bf16.msra.mxu0 0
        %392 = vmatprep.subr.bf16.mxu0 0
        %393 = vmatpush2.bf16.msra.mxu0 0
        %394 = vmatprep.subr.bf16.mxu0 0
        %395 = vmatpush2.bf16.msra.mxu0 0
        %396 = vmatprep.mubr.bf16.mxu0 0
        %397 = vmatmul.mubr.bf16.gmra.mxu0 %v308
        %v398 = vpop.f32.mrf.mxu0
        %v399 = vadd.f32 %v290, %v398
        %v400 = vpop.f32.mrf.mxu0
        %v401 = vpop.f32.mrf.mxu0
        %v402 = vadd.f32 %v290, %v401
        %v403 = vpop.f32.mrf.mxu0
        %404 = vmatprep.mubr.bf16.mxu0 0
        %405 = vmatmul.mubr.bf16.gmra.mxu0 %v309
        %v406 = vpop.f32.mrf.mxu0
        %v407 = vadd.f32 %v290, %v406
        %v408 = vpop.f32.mrf.mxu0
        %v409 = vpop.f32.mrf.mxu0
        %v410 = vadd.f32 %v290, %v409
        %v411 = vpop.f32.mrf.mxu0
        %412 = vmatprep.mubr.bf16.mxu0 0
        %413 = vmatmul.mubr.bf16.gmra.mxu0 %v310
        %v414 = vpop.f32.mrf.mxu0
        %v415 = vadd.f32 %v290, %v414
        %v416 = vpop.f32.mrf.mxu0
        %v417 = vpop.f32.mrf.mxu0
        %v418 = vadd.f32 %v290, %v417
        %v419 = vpop.f32.mrf.mxu0
        %420 = vmatprep.mubr.bf16.mxu0 0
        %421 = vmatmul.mubr.bf16.gmra.mxu0 %v311
        %v422 = vpop.f32.mrf.mxu0
        %v423 = vadd.f32 %v290, %v422
        %v424 = vpop.f32.mrf.mxu0
        %v425 = vpop.f32.mrf.mxu0
        %v426 = vadd.f32 %v290, %v425
        %v427 = vpop.f32.mrf.mxu0
        %428 = vdwg.mxu0
        %v429 = vadd.f32 %v399, %v402
        %v430 = vadd.f32 %v429, %v407
        %v431 = vadd.f32 %v430, %v410
        %v432 = vadd.f32 %v431, %v415
        %v433 = vadd.f32 %v432, %v418
        %v434 = vadd.f32 %v433, %v423
        %v435 = vadd.f32 %v434, %v426
        %v436 = vrot.slane %v435, 4
        %v437 = vadd.f32 %v435, %v436
        %v438 = vrot.slane %v437, 2
        %v439 = vadd.f32 %v437, %v438
        %v440 = vrot.slane %v439, 1
        %v441 = vadd.f32 %v439, %v440
        %v442 = vmul.f32 %v399, %v399
        %v443 = vmul.f32 %v402, %v402
        %v444 = vmul.f32 %v407, %v407
        %v445 = vmul.f32 %v410, %v410
        %v446 = vmul.f32 %v415, %v415
        %v447 = vmul.f32 %v418, %v418
        %v448 = vmul.f32 %v423, %v423
        %v449 = vmul.f32 %v426, %v426
        %v450 = vadd.f32 %v442, %v443
        %v451 = vadd.f32 %v450, %v444
        %v452 = vadd.f32 %v451, %v445
        %v453 = vadd.f32 %v452, %v446
        %v454 = vadd.f32 %v453, %v447
        %v455 = vadd.f32 %v454, %v448
        %v456 = vadd.f32 %v455, %v449
        %v457 = vrot.slane %v456, 4
        %v458 = vadd.f32 %v456, %v457
        %v459 = vrot.slane %v458, 2
        %v460 = vadd.f32 %v458, %v459
        %v461 = vrot.slane %v460, 1
        %v462 = vadd.f32 %v460, %v461
        %v463 = vmul.f32 %v441, 0.015625
        %v464 = vmul.f32 %v462, 0.015625
        %v465 = vmul.f32 %v463, %v463
        %v466 = vsub.f32 %v464, %v465
        %v467 = vmax.f32 %v466, 0.0
        %v468 = vadd.f32 %v467, 1e-05
        %v469 = vrsqrt.pop %v468
        %v470 = vld [vmem:[%s4] sm:$0x1]
        %v471 = vmul.f32 %v469, %v470
        %v472 = vsub.f32 %v399, %v463
        %v473 = vsub.f32 %v402, %v463
        %v474 = vsub.f32 %v407, %v463
        %v475 = vsub.f32 %v410, %v463
        %v476 = vsub.f32 %v415, %v463
        %v477 = vsub.f32 %v418, %v463
        %v478 = vsub.f32 %v423, %v463
        %v479 = vsub.f32 %v426, %v463
        %v480 = vlaneseq
        %v481 = vshrl.u32 %v480, 7
        %v482 = vsub.s32 0, %v481
        %v483 = vrot.slane %v471, %v482
        %v484 = vmul.f32 %v472, %v483
        %v485 = vmul.f32 %v473, %v483
        %v486 = vmul.f32 %v474, %v483
        %v487 = vmul.f32 %v475, %v483
        %v488 = vmul.f32 %v476, %v483
        %v489 = vmul.f32 %v477, %v483
        %v490 = vmul.f32 %v478, %v483
        %v491 = vmul.f32 %v479, %v483
        %v492 = vld [vmem:[%s5] sm:$0x1]
        %v494 = vlaneseq
        %v495 = vshrl.u32 %v494, 7
        %v496 = vsub.s32 0, %v495
        %v497 = vrot.slane %v492, %v496
        %v499 = vadd.f32 %v484, %v497
        %v500 = vadd.f32 %v485, %v497
        %v501 = vadd.f32 %v486, %v497
        %v502 = vadd.f32 %v487, %v497
        %v503 = vadd.f32 %v488, %v497
        %v504 = vadd.f32 %v489, %v497
        %v505 = vadd.f32 %v490, %v497
        %v506 = vadd.f32 %v491, %v497
        %vm507 = vcmp.gt.f32.partialorder %v499, 0.0
        %vm508 = vcmp.gt.f32.partialorder %v500, 0.0
        %vm509 = vcmp.gt.f32.partialorder %v501, 0.0
        %vm510 = vcmp.gt.f32.partialorder %v502, 0.0
        %vm511 = vcmp.gt.f32.partialorder %v503, 0.0
        %vm512 = vcmp.gt.f32.partialorder %v504, 0.0
        %vm513 = vcmp.gt.f32.partialorder %v505, 0.0
        %vm514 = vcmp.gt.f32.partialorder %v506, 0.0
        %v515 = vmul.f32 %v499, 0.2
        %v516 = vmul.f32 %v500, 0.2
        %v517 = vmul.f32 %v501, 0.2
        %v518 = vmul.f32 %v502, 0.2
        %v519 = vmul.f32 %v503, 0.2
        %v520 = vmul.f32 %v504, 0.2
        %v521 = vmul.f32 %v505, 0.2
        %v522 = vmul.f32 %v506, 0.2
        %v523 = vsel %vm507, %v499, %v515
        %v524 = vsel %vm508, %v500, %v516
        %v525 = vsel %vm509, %v501, %v517
        %v526 = vsel %vm510, %v502, %v518
        %v527 = vsel %vm511, %v503, %v519
        %v528 = vsel %vm512, %v504, %v520
        %v529 = vsel %vm513, %v505, %v521
        %v530 = vsel %vm514, %v506, %v522
        %531 = vst [vmem:[%s259] sm:$0xff] %v523
        %532 = vst [vmem:[%s259 + $0x8] sm:$0xff] %v524
        %533 = vst [vmem:[%s259 + $0x10] sm:$0xff] %v525
        %534 = vst [vmem:[%s259 + $0x18] sm:$0xff] %v526
        %535 = vst [vmem:[%s259 + $0x20] sm:$0xff] %v527
        %536 = vst [vmem:[%s259 + $0x28] sm:$0xff] %v528
        %537 = vst [vmem:[%s259 + $0x30] sm:$0xff] %v529
        %538 = vst [vmem:[%s259 + $0x38] sm:$0xff] %v530
        %s539 = sand.u32 %s143, 1
        %s540 = scalar_lea.sflag [#allocation6], %s539
        %s541 = sand.u32 %s143, 1
        %s542 = smul.addr %s541, 64
        %s543 = scalar_lea.vmem [#allocation9], %s542
        // Predicated region
        $region49: #{tpu_custom_call.1} parent=39 // pred_check
          %p544 = pneg %p153
        $region50: #{tpu_custom_call.1} parent=39 // pred_check_branch
          %546 = sbr.rel (%p544) target = $region52
        $region51: #{tpu_custom_call.1} parent=39 // pred_region
          %s548 = ssub.s32 1024, 1024
          %549 = vsyncadd %s540, %s548
          %s550 = smul.addr %s25, 8
          %s551 = smul.addr %s550, 128
          %s552 = scalar_lea.hbm %s6, %s551
          %s553 = sshll.u32 %s543, 4
          %s554 = int_to_ptr.vmem [resolvable:$true] %s553
          %559 = dma.vmem_to_hbm [thread:$0]  %s554, 1024, %s552, %s540, 128, 128, 8
        $region52: #{tpu_custom_call.1} parent=39 // pred_fallthru
          _
      $region40: #{tpu_custom_call.1} parent=5 // pred_fallthru
        _
      %p560 = scmp.le.s32.totalorder 2, %s20
      // Predicated region
      $region53: #{tpu_custom_call.1} parent=5 // pred_check
        %p561 = pneg %p560
      $region54: #{tpu_custom_call.1} parent=5 // pred_check_branch
        %563 = sbr.rel (%p561) target = $region56
      $region55: #{tpu_custom_call.1} parent=5 // pred_region
        %s564 = ssub.s32 %s20, 2
        // Predicated region
        $region57: #{tpu_custom_call.1} parent=55 // pred_check
          %p565 = pneg %p159
        $region58: #{tpu_custom_call.1} parent=55 // pred_check_branch
          %567 = sbr.rel (%p565) target = $region60
        $region59: #{tpu_custom_call.1} parent=55 // pred_region
          %s568 = sand.u32 %s144, 1
          %s569 = scalar_lea.sflag [#allocation6], %s568
          %s570 = sand.u32 %s144, 1
          %s571 = smul.addr %s570, 64
          %s572 = scalar_lea.vmem [#allocation9], %s571
          %573 = dma.done %s569, 1024
        $region60: #{tpu_custom_call.1} parent=55 // pred_fallthru
          _
      $region56: #{tpu_custom_call.1} parent=5 // pred_fallthru
        _
    $region6: #{tpu_custom_call.1} parent=1 // loop_footer
      %s24 = sadd.s32 1, %s20
    $region7: #{tpu_custom_call.1} parent=1 // loop_footer_branch
      %19 = sbr.rel target = $region3
    $region8: #{tpu_custom_call.1} parent=1 // loop_exit
      _
    %574 = vsyncpa [#allocation5], 1
    %s575 = scalar_lea.sflag [#allocation5], 1
    %576 = vsyncpa %s575, 1
    %577 = vsyncpa [#allocation8], 1
    %578 = vsyncpa [#allocation6], 1
    %s579 = scalar_lea.sflag [#allocation6], 1
    %580 = vsyncpa %s579, 1

</llo_original>
